<compile_context>
chip_gen: v7x
topology: tpu7x:2x2x1
jax: 0.10.0
libtpu: 0.0.40
codegen_flags: <defaults>
</compile_context>

<pallas_src>
import math
import functools

import jax
import jax.numpy as jnp
from jax.experimental import pallas as pl
from jax.experimental.pallas import tpu as pltpu


# ----------------------------- Pallas kernel -------------------------------

def _kde_kernel(feat_ref, bw_ref, data_ref, out_ref, acc_sum_ref, acc_sq_ref,
                *, n_total, pack):
    """Streaming telescoped KDE reduction.

    Grid: (core_split "parallel", dataset tiles "arbitrary").  Per tile we
    accumulate lane/sublane-aligned partial column-sums and square-sums of the
    dataset; the per-core finalize combines them with the transformed features.
    """
    c = pl.program_id(0)          # "parallel" core-split axis
    k = pl.program_id(1)          # "arbitrary" reduction axis (dataset tiles)

    @pl.when(k == 0)
    def _():
        acc_sum_ref[...] = jnp.zeros_like(acc_sum_ref)
        acc_sq_ref[...] = jnp.zeros_like(acc_sq_ref)

    d = data_ref[...].astype(jnp.float32)            # (tile_rows, Dp)
    tr, dp = d.shape
    d3 = d.reshape(tr // 8, 8, dp)                   # vreg-aligned slab split
    acc_sum_ref[...] += jnp.sum(d3, axis=0)          # (8, Dp) partial col-sum
    acc_sq_ref[...] += jnp.sum(d3 * d3, axis=0)      # (8, Dp) partial sq-sum

    @pl.when(k == pl.num_programs(1) - 1)
    def _():
        col = jnp.sum(acc_sum_ref[...], axis=0, keepdims=True)         # (1, Dp)
        sumsq = jnp.sum(acc_sq_ref[...], axis=(0, 1), keepdims=True)   # (1, 1)
        f = jnp.dot(feat_ref[...], bw_ref[...],
                    preferred_element_type=jnp.float32)                # (B, D)
        fsq = jnp.sum(f * f, axis=-1, keepdims=True)                   # (B, 1)
        f_tiled = jnp.tile(f, (1, pack))                               # (B, Dp)
        cross = jnp.sum(f_tiled * col, axis=-1, keepdims=True)         # (B, 1)
        # N*||f||^2 is contributed exactly once (by the c == 0 partial).
        coeff = jnp.where(c == 0, jnp.float32(n_total), jnp.float32(0.0))
        partial = coeff * fsq + sumsq - 2.0 * cross                    # (B, 1)
        # Lane-dense, unmasked store of this core's partial sum of squared
        # distances (every lane holds the same value; wrapper reads lane 0).
        out_ref[...] = jnp.broadcast_to(partial, out_ref.shape)        # (B, 128)


# ------------------------------- wrapper ------------------------------------

def _cdiv(a, b):
    return -(-a // b)


def _round_up(a, b):
    return _cdiv(a, b) * b


def kde_forward(features, bw_transform, dataset_t, log_norm, *,
                tile_rows_max=2048, num_cores=2):
    """Pallas-backed GaussianKDE.forward.

    Args:
      features:      [B, D] feature vectors.
      bw_transform:  [D, D] bandwidth (Cholesky) transform.
      dataset_t:     [N, D] dataset already multiplied by bw_transform (as in
                     fit).  float32 or bfloat16 (bf16 halves HBM traffic; the
                     accumulation is always float32).
      log_norm:      scalar, log of the KDE normalization constant.
      tile_rows_max: max packed rows streamed per grid step.
      num_cores:     requested "parallel" split of the reduction (v7x megacore);
                     auto-reduced so no core is empty.  No-op on 1-TC chips.
    Returns:
      [B] float32 KDE log estimates.
    """
    B, D = features.shape
    N, D2 = dataset_t.shape
    assert D == D2, "feature dimension mismatch"

    features = features.astype(jnp.float32)
    bw_transform = bw_transform.astype(jnp.float32)

    # Lane-dense packing: `pack` samples side by side in one 128-lane row.
    pack = 128 // D if (D < 128 and 128 % D == 0) else 1
    dp = pack * D

    itemsize = jnp.dtype(dataset_t.dtype).itemsize
    sub = {4: 8, 2: 16, 1: 32}.get(itemsize, 8)      # sublane packing granule

    rows = _cdiv(N, pack)                            # packed rows of real data
    # Tile sizing: as large as possible to amortize per-step overhead, capped
    # by a ~2 MiB-per-buffer VMEM budget (x2 double buffering, fits the
    # default scoped VMEM limit on v5e/v6e/v7x).
    vmem_rows = max(sub, ((2 << 20) // (dp * itemsize)) // sub * sub)
    tile_rows = max(sub, min(_round_up(tile_rows_max, sub), vmem_rows,
                             _round_up(rows, sub)))
    n_tiles = _cdiv(rows, tile_rows)
    n_cores = max(1, min(num_cores, n_tiles))        # don't create empty cores
    n_tiles = _round_up(n_tiles, n_cores)
    tiles_per_core = n_tiles // n_cores
    rows_pad = n_tiles * tile_rows
    n_samples_pad = rows_pad * pack

    data = dataset_t
    if n_samples_pad != N:                           # ragged N: zero-pad
        data = jnp.pad(data, ((0, n_samples_pad - N), (0, 0)))
    packed = data.reshape(rows_pad, dp)

    kernel = functools.partial(_kde_kernel, n_total=N, pack=pack)

    out = pl.pallas_call(
        kernel,
        out_shape=jax.ShapeDtypeStruct((B, n_cores * 128), jnp.float32),
        grid_spec=pltpu.PrefetchScalarGridSpec(
            num_scalar_prefetch=0,
            grid=(n_cores, tiles_per_core),
            in_specs=[
                pl.BlockSpec((B, D), lambda c, k: (0, 0)),          # features
                pl.BlockSpec((D, D), lambda c, k: (0, 0)),          # bw_transform
                pl.BlockSpec((tile_rows, dp),                       # dataset tile
                             lambda c, k: (c * tiles_per_core + k, 0)),
            ],
            out_specs=pl.BlockSpec((B, 128), lambda c, k: (0, c)),
            scratch_shapes=[
                pltpu.VMEM((8, dp), jnp.float32),   # column-sum accumulator
                pltpu.VMEM((8, dp), jnp.float32),   # square-sum accumulator
            ],
        ),
        compiler_params=pltpu.CompilerParams(
            dimension_semantics=("parallel", "arbitrary")),
    )(features, bw_transform, packed)

    # Combine the per-core partial sums of squared distances in the wrapper.
    partials = out.reshape(B, n_cores, 128)[:, :, 0]                # (B, cores)
    sum_sq_dist = jnp.sum(partials, axis=1)                         # (B,)
    mean_sq_dist = sum_sq_dist / jnp.float32(N)
    return jnp.asarray(log_norm, jnp.float32) - 0.5 * mean_sq_dist  # (B,)


# ----------------------- fit() (plain-JAX parameter setup) -----------------
# TODO(synk): DynamicBufferModule state-dict resizing is torch framework
# plumbing with no Pallas equivalent; only the math of fit() is reproduced.

def kde_fit(dataset):
    """Replicates GaussianKDE.fit: returns (bw_transform, transformed dataset, log_norm)."""
    num_samples, dimension = dataset.shape
    factor = num_samples ** (-1.0 / (dimension + 4))

    t = dataset.T
    mean = jnp.mean(t, axis=1, keepdims=True)
    cov = (t - mean) @ (t - mean).T / (t.shape[1] - 1)

    inv_cov = jnp.linalg.inv(cov) / (factor ** 2)
    bw_transform = jnp.linalg.cholesky(inv_cov)          # lower-triangular

    dataset_t = dataset @ bw_transform
    norm = jnp.prod(jnp.diag(bw_transform)) * math.pow(2 * math.pi, -dimension / 2)
    log_norm = jnp.log(norm)
    return (bw_transform.astype(jnp.float32),
            dataset_t.astype(jnp.float32),
            log_norm.astype(jnp.float32))


# ------------------------------- reference ---------------------------------

def kde_forward_ref(features, bw_transform, dataset_t, log_norm):
    f = features @ bw_transform                                   # [B, D]
    diff = dataset_t[None, :, :] - f[:, None, :]                  # [B, N, D]
    emb = log_norm - jnp.sum(diff * diff, axis=-1) / 2.0          # [B, N]
    return jnp.mean(emb, axis=-1)                                 # [B]


# --------------------------------- main -------------------------------------

if __name__ == "__main__":
    key = jax.random.PRNGKey(0)
    k1, k2, k3, k4 = jax.random.split(key, 4)

    # --- test 1: small shapes, f32 dataset, single tile / single core ------
    B, D, N = 8, 32, 256
    dataset = jax.random.normal(k1, (N, D), dtype=jnp.float32)
    features = jax.random.normal(k2, (B, D), dtype=jnp.float32)
    bw, data_t, log_norm = kde_fit(dataset)

    est = jax.block_until_ready(kde_forward(features, bw, data_t, log_norm))
    ref = kde_forward_ref(features, bw, data_t, log_norm)
    assert est.shape == (B,)
    assert jnp.allclose(est, ref, rtol=1e-4, atol=1e-4), (est, ref)

    # --- test 2: ragged N, bf16 dataset stream, multi-tile, 2-core split ---
    B2, D2, N2 = 16, 32, 5000
    dataset2 = jax.random.normal(k3, (N2, D2), dtype=jnp.float32)
    features2 = jax.random.normal(k4, (B2, D2), dtype=jnp.float32)
    bw2, data_t2, log_norm2 = kde_fit(dataset2)
    data_t2_bf16 = data_t2.astype(jnp.bfloat16)

    est2 = jax.block_until_ready(
        kde_forward(features2, bw2, data_t2_bf16, log_norm2,
                    tile_rows_max=256, num_cores=2))
    ref2 = kde_forward_ref(features2, bw2,
                           data_t2_bf16.astype(jnp.float32), log_norm2)
    assert est2.shape == (B2,)
    assert jnp.allclose(est2, ref2, rtol=1e-3, atol=1e-3), (est2, ref2)

    print("KERNEL_OK")
</pallas_src>

<mosaic_0001>
module attributes {stable_mosaic.version = 11 : i64} {
  func.func @_kde_kernel(%arg0: i32, %arg1: i32, %arg2: memref<8x32xf32, #tpu.memory_space<vmem>>, %arg3: memref<32x32xf32, #tpu.memory_space<vmem>>, %arg4: memref<64x128xf32, #tpu.memory_space<vmem>>, %arg5: memref<8x128xf32, #tpu.memory_space<vmem>>, %arg6: memref<8x128xf32, #tpu.memory_space<vmem>>, %arg7: memref<8x128xf32, #tpu.memory_space<vmem>>) attributes {dimension_semantics = [#tpu.dimension_semantics<parallel>, #tpu.dimension_semantics<arbitrary>], iteration_bounds = array<i64: 1, 1>, scalar_prefetch = 0 : i64, scratch_operands = 2 : i64, tpu.core_type = #tpu.core_type<tc>, window_params = [{pipeline_mode = #tpu.pipeline_mode<synchronous>, transform_indices = @transform_0, window_bounds = array<i64: 8, 32>}, {pipeline_mode = #tpu.pipeline_mode<synchronous>, transform_indices = @transform_1, window_bounds = array<i64: 32, 32>}, {transform_indices = @transform_2, window_bounds = array<i64: 64, 128>}, {transform_indices = @transform_3, window_bounds = array<i64: 8, 128>}]} {
    %c0_i32 = arith.constant 0 : i32
    %0 = arith.cmpi eq, %arg1, %c0_i32 : i32
    %1 = arith.extui %0 : i1 to i32
    %c0_i32_0 = arith.constant 0 : i32
    %2 = arith.cmpi ne, %1, %c0_i32_0 : i32
    scf.if %2 {
      %cst_13 = arith.constant 0.000000e+00 : f32
      %17 = vector.broadcast %cst_13 : f32 to vector<8x128xf32>
      %c0_14 = arith.constant 0 : index
      %c0_15 = arith.constant 0 : index
      %18 = vector.load %arg6[%c0_14, %c0_15] : memref<8x128xf32, #tpu.memory_space<vmem>>, vector<8x128xf32>
      tpu.vector_store %arg6[%c0_14, %c0_15], %17 {strides = array<i32>} : memref<8x128xf32, #tpu.memory_space<vmem>>, vector<8x128xf32>,
      %cst_16 = arith.constant 0.000000e+00 : f32
      %19 = vector.broadcast %cst_16 : f32 to vector<8x128xf32>
      %c0_17 = arith.constant 0 : index
      %c0_18 = arith.constant 0 : index
      %20 = vector.load %arg7[%c0_17, %c0_18] : memref<8x128xf32, #tpu.memory_space<vmem>>, vector<8x128xf32>
      tpu.vector_store %arg7[%c0_17, %c0_18], %19 {strides = array<i32>} : memref<8x128xf32, #tpu.memory_space<vmem>>, vector<8x128xf32>,
    } else {
    }
    %c0 = arith.constant 0 : index
    %c0_1 = arith.constant 0 : index
    %3 = vector.load %arg4[%c0, %c0_1] : memref<64x128xf32, #tpu.memory_space<vmem>>, vector<64x128xf32>
    %4 = vector.shape_cast %3 : vector<64x128xf32> to vector<8x8x128xf32>
    %c0_2 = arith.constant 0 : index
    %c0_3 = arith.constant 0 : index
    %5 = vector.load %arg6[%c0_2, %c0_3] : memref<8x128xf32, #tpu.memory_space<vmem>>, vector<8x128xf32>
    %cst = arith.constant dense<0.000000e+00> : vector<8x128xf32>
    %6 = vector.multi_reduction <add>, %4, %cst [0] : vector<8x8x128xf32> to vector<8x128xf32>
    %7 = arith.addf %5, %6 : vector<8x128xf32>
    %c0_4 = arith.constant 0 : index
    %c0_5 = arith.constant 0 : index
    %8 = vector.load %arg6[%c0_4, %c0_5] : memref<8x128xf32, #tpu.memory_space<vmem>>, vector<8x128xf32>
    tpu.vector_store %arg6[%c0_4, %c0_5], %7 {strides = array<i32>} : memref<8x128xf32, #tpu.memory_space<vmem>>, vector<8x128xf32>,
    %c0_6 = arith.constant 0 : index
    %c0_7 = arith.constant 0 : index
    %9 = vector.load %arg7[%c0_6, %c0_7] : memref<8x128xf32, #tpu.memory_space<vmem>>, vector<8x128xf32>
    %10 = arith.mulf %4, %4 : vector<8x8x128xf32>
    %cst_8 = arith.constant dense<0.000000e+00> : vector<8x128xf32>
    %11 = vector.multi_reduction <add>, %10, %cst_8 [0] : vector<8x8x128xf32> to vector<8x128xf32>
    %12 = arith.addf %9, %11 : vector<8x128xf32>
    %c0_9 = arith.constant 0 : index
    %c0_10 = arith.constant 0 : index
    %13 = vector.load %arg7[%c0_9, %c0_10] : memref<8x128xf32, #tpu.memory_space<vmem>>, vector<8x128xf32>
    tpu.vector_store %arg7[%c0_9, %c0_10], %12 {strides = array<i32>} : memref<8x128xf32, #tpu.memory_space<vmem>>, vector<8x128xf32>,
    %c0_i32_11 = arith.constant 0 : i32
    %14 = arith.cmpi eq, %arg1, %c0_i32_11 : i32
    %15 = arith.extui %14 : i1 to i32
    %c0_i32_12 = arith.constant 0 : i32
    %16 = arith.cmpi ne, %15, %c0_i32_12 : i32
    scf.if %16 {
      %c0_13 = arith.constant 0 : index
      %c0_14 = arith.constant 0 : index
      %17 = vector.load %arg6[%c0_13, %c0_14] : memref<8x128xf32, #tpu.memory_space<vmem>>, vector<8x128xf32>
      %cst_15 = arith.constant dense<0.000000e+00> : vector<128xf32>
      %18 = vector.multi_reduction <add>, %17, %cst_15 [0] : vector<8x128xf32> to vector<128xf32>
      %19 = vector.shape_cast %18 : vector<128xf32> to vector<1x128xf32>
      %c0_16 = arith.constant 0 : index
      %c0_17 = arith.constant 0 : index
      %20 = vector.load %arg7[%c0_16, %c0_17] : memref<8x128xf32, #tpu.memory_space<vmem>>, vector<8x128xf32>
      %21 = vector.shape_cast %20 : vector<8x128xf32> to vector<1x8x128xf32>
      %cst_18 = arith.constant dense<0.000000e+00> : vector<1xf32>
      %22 = vector.multi_reduction <add>, %21, %cst_18 [1, 2] : vector<1x8x128xf32> to vector<1xf32>
      %23 = vector.shape_cast %22 : vector<1xf32> to vector<1x1x1xf32>
      %24 = vector.extract %23[0, 0, 0] : f32 from vector<1x1x1xf32>
      %25 = vector.broadcast %24 : f32 to vector<1x1xf32>
      %c0_19 = arith.constant 0 : index
      %c0_20 = arith.constant 0 : index
      %26 = vector.load %arg2[%c0_19, %c0_20] : memref<8x32xf32, #tpu.memory_space<vmem>>, vector<8x32xf32>
      %c0_21 = arith.constant 0 : index
      %c0_22 = arith.constant 0 : index
      %27 = vector.load %arg3[%c0_21, %c0_22] : memref<32x32xf32, #tpu.memory_space<vmem>>, vector<32x32xf32>
      %cst_23 = arith.constant dense<0.000000e+00> : vector<8x32xf32>
      %28 = tpu.matmul %26, %27, %cst_23 {dimension_numbers = #tpu.dot_dimension_numbers<[1], [0], [0], [1], [0, 0, 1, 1], [], []>} : vector<8x32xf32>, vector<32x32xf32>, vector<8x32xf32> -> vector<8x32xf32>
      %29 = arith.mulf %28, %28 : vector<8x32xf32>
      %cst_24 = arith.constant dense<0.000000e+00> : vector<8xf32>
      %30 = vector.multi_reduction <add>, %29, %cst_24 [1] : vector<8x32xf32> to vector<8xf32>
      %31 = vector.shape_cast %30 : vector<8xf32> to vector<8x1xf32>
      %32 = tpu.concatenate %28, %28, %28, %28 in 1 : vector<8x32xf32>, vector<8x32xf32>, vector<8x32xf32>, vector<8x32xf32> -> vector<8x128xf32>
      %33 = vector.broadcast %19 : vector<1x128xf32> to vector<8x128xf32>
      %34 = arith.mulf %32, %33 : vector<8x128xf32>
      %cst_25 = arith.constant dense<0.000000e+00> : vector<8xf32>
      %35 = vector.multi_reduction <add>, %34, %cst_25 [1] : vector<8x128xf32> to vector<8xf32>
      %36 = vector.shape_cast %35 : vector<8xf32> to vector<8x1xf32>
      %c0_i32_26 = arith.constant 0 : i32
      %37 = arith.cmpi eq, %arg0, %c0_i32_26 : i32
      %cst_27 = arith.constant 2.560000e+02 : f32
      %cst_28 = arith.constant 0.000000e+00 : f32
      %38 = arith.select %37, %cst_27, %cst_28 : f32
      %39 = vector.broadcast %38 : f32 to vector<8x1xf32>
      %40 = arith.mulf %39, %31 : vector<8x1xf32>
      %41 = vector.broadcast %25 : vector<1x1xf32> to vector<8x1xf32>
      %42 = arith.addf %40, %41 : vector<8x1xf32>
      %cst_29 = arith.constant 2.000000e+00 : f32
      %43 = vector.broadcast %cst_29 : f32 to vector<8x1xf32>
      %44 = arith.mulf %43, %36 : vector<8x1xf32>
      %45 = arith.subf %42, %44 : vector<8x1xf32>
      %46 = vector.shape_cast %45 : vector<8x1xf32> to vector<8x1xf32>
      %47 = vector.broadcast %46 : vector<8x1xf32> to vector<8x128xf32>
      %c0_30 = arith.constant 0 : index
      %c0_31 = arith.constant 0 : index
      %48 = vector.load %arg5[%c0_30, %c0_31] : memref<8x128xf32, #tpu.memory_space<vmem>>, vector<8x128xf32>
      tpu.vector_store %arg5[%c0_30, %c0_31], %47 {strides = array<i32>} : memref<8x128xf32, #tpu.memory_space<vmem>>, vector<8x128xf32>,
    } else {
    }
    return
  }
  func.func @transform_0(%arg0: i32, %arg1: i32) -> (i32, i32) {
    %c0_i32 = arith.constant 0 : i32
    %c0_i32_0 = arith.constant 0 : i32
    %c0_i32_1 = arith.constant 0 : i32
    return %c0_i32, %c0_i32_0 : i32, i32
  }
  func.func @transform_1(%arg0: i32, %arg1: i32) -> (i32, i32) {
    %c0_i32 = arith.constant 0 : i32
    %c0_i32_0 = arith.constant 0 : i32
    %c0_i32_1 = arith.constant 0 : i32
    return %c0_i32, %c0_i32_0 : i32, i32
  }
  func.func @transform_2(%arg0: i32, %arg1: i32) -> (i32, i32) {
    %c1_i32 = arith.constant 1 : i32
    %0 = arith.muli %arg0, %c1_i32 : i32
    %1 = arith.addi %0, %arg1 : i32
    %c0_i32 = arith.constant 0 : i32
    %c0_i32_0 = arith.constant 0 : i32
    return %1, %c0_i32 : i32, i32
  }
  func.func @transform_3(%arg0: i32, %arg1: i32) -> (i32, i32) {
    %c0_i32 = arith.constant 0 : i32
    %c0_i32_0 = arith.constant 0 : i32
    return %c0_i32, %arg0 : i32, i32
  }
}

</mosaic_0001>

<llo_original>
// kernel: tpu_custom_call.1
$region0: #{tpu_custom_call.1}
  #allocation0 [shape = 'u32[]', space=smem, size = 0x4, offset = 0x4, fixed_abs, tag = 'smem constant byte address 0x4 - core index']
  #allocation1 [shape = 'u32[144,128]{1,0:T(1,128)}', space=vmem, size = 0x12000, scoped, tag = 'internal scratch']
  #allocation2 [shape = 'f32[8,128]{1,0:T(8,128)}', space=vmem, size = 0x1000, scoped, tag = 'scratch operand']
  #allocation3 [shape = 'f32[8,128]{1,0:T(8,128)}', space=vmem, size = 0x1000, scoped, tag = 'scratch operand']
  %s0 = inlined_call_operand.hbm [shape: f32[8,32], index: 0, kind: input, shape index: {}]
  %s1 = inlined_call_operand.hbm [shape: f32[32,32], index: 1, kind: input, shape index: {}]
  %s2 = inlined_call_operand.hbm [shape: f32[64,128], index: 2, kind: input, shape index: {}]
  %s3 = inlined_call_operand.hbm [shape: f32[8,128], index: 3, kind: output, shape index: {}]
  %s4 = sld [smem:[#allocation0]]
  $region42: #{tpu_custom_call.1} parent=0
    _
  %s6 = ssub.s32 1, %s4
  %s7 = scalar_select 0, %s6, %s4
  $region1: #{tpu_custom_call.1} parent=0
    #allocation4 [shape = 'u8[4096]{0}', space=vmem, size = 0x1000, scoped, tag = 'input window, operand 0, single buffered']
    #allocation5 [shape = 's32[1]{0}', space=sflag, size = 0x4, scoped, tag = 'scoped memory for tpu_custom_call.1']
    #allocation6 [shape = 's32[1]{0}', space=sflag, size = 0x4, scoped, tag = 'scoped memory for tpu_custom_call.1']
    #allocation7 [shape = 'u8[16384]{0}', space=vmem, size = 0x4000, scoped, tag = 'input window, operand 1, single buffered']
    #allocation8 [shape = 's32[1]{0}', space=sflag, size = 0x4, scoped, tag = 'scoped memory for tpu_custom_call.1']
    #allocation9 [shape = 'u8[32768]{0}', space=vmem, size = 0x8000, scoped, tag = 'input window, operand 2, single buffered']
    #allocation10 [shape = 'u8[4096]{0}', space=vmem, size = 0x1000, scoped, tag = 'output window, operand 0, single buffered']
    %8 = vsyncpa [#allocation5], 0
    %9 = vsyncpa [#allocation8], 0
    %10 = vsyncpa [#allocation6], 0
    // Predicated region
    $region2: #{tpu_custom_call.1} parent=1 // pred_check
      _
    $region3: #{tpu_custom_call.1} parent=1 // pred_check_branch
      %12 = sbr.rel (0) target = $region5
    $region4: #{tpu_custom_call.1} parent=1 // pred_region
      %s14 = ssub.s32 128, 128
      %15 = vsyncadd [#allocation5], %s14
      %s17 = sshll.u32 [#allocation4], 4
      %s18 = int_to_ptr.vmem [resolvable:$true] %s17
      %20 = dma.hbm_to_vmem [thread:$0]  %s0, 128, %s18, [#allocation5]
    $region5: #{tpu_custom_call.1} parent=1 // pred_fallthru
      _
    // Predicated region
    $region6: #{tpu_custom_call.1} parent=1 // pred_check
      _
    $region7: #{tpu_custom_call.1} parent=1 // pred_check_branch
      %22 = sbr.rel (0) target = $region9
    $region8: #{tpu_custom_call.1} parent=1 // pred_region
      %s24 = ssub.s32 512, 512
      %25 = vsyncadd [#allocation8], %s24
      %s26 = sshll.u32 [#allocation7], 4
      %s27 = int_to_ptr.vmem [resolvable:$true] %s26
      %32 = dma.hbm_to_vmem [thread:$0]  %s1, 512, %s27, [#allocation8], 128, 128, 8
    $region9: #{tpu_custom_call.1} parent=1 // pred_fallthru
      _
    // Predicated region
    $region10: #{tpu_custom_call.1} parent=1 // pred_check
      _
    $region11: #{tpu_custom_call.1} parent=1 // pred_check_branch
      %34 = sbr.rel (0) target = $region13
    $region12: #{tpu_custom_call.1} parent=1 // pred_region
      %s35 = sadd.s32 0, 0
      %s36 = smul.u32 8, %s35
      %s38 = ssub.s32 1024, 1024
      %39 = vsyncadd [#allocation8], %s38
      %s40 = smul.addr %s36, 128
      %s41 = scalar_lea.hbm %s2, %s40
      %s42 = sshll.u32 [#allocation9], 4
      %s43 = int_to_ptr.vmem [resolvable:$true] %s42
      %48 = dma.hbm_to_vmem [thread:$0]  %s41, 1024, %s43, [#allocation8], 128, 128, 8
    $region13: #{tpu_custom_call.1} parent=1 // pred_fallthru
      _
    // Predicated region
    $region14: #{tpu_custom_call.1} parent=1 // pred_check
      _
    $region15: #{tpu_custom_call.1} parent=1 // pred_check_branch
      %50 = sbr.rel (0) target = $region17
    $region16: #{tpu_custom_call.1} parent=1 // pred_region
      %51 = dma.done [#allocation5], 128
    $region17: #{tpu_custom_call.1} parent=1 // pred_fallthru
      _
    // Predicated region
    $region18: #{tpu_custom_call.1} parent=1 // pred_check
      _
    $region19: #{tpu_custom_call.1} parent=1 // pred_check_branch
      %53 = sbr.rel (0) target = $region21
    $region20: #{tpu_custom_call.1} parent=1 // pred_region
      %54 = dma.done [#allocation8], 512
    $region21: #{tpu_custom_call.1} parent=1 // pred_fallthru
      _
    // Predicated region
    $region22: #{tpu_custom_call.1} parent=1 // pred_check
      _
    $region23: #{tpu_custom_call.1} parent=1 // pred_check_branch
      %56 = sbr.rel (0) target = $region25
    $region24: #{tpu_custom_call.1} parent=1 // pred_region
      %57 = dma.done [#allocation8], 1024
    $region25: #{tpu_custom_call.1} parent=1 // pred_fallthru
      _
    %s58 = sadd.s32 0, 0
    %s59 = smul.u32 8, %s58
    %p60 = scmp.eq.s32.totalorder 0, 0
    // Predicated region
    $region26: #{tpu_custom_call.1} parent=1 // pred_check
      %p61 = pneg %p60
    $region27: #{tpu_custom_call.1} parent=1 // pred_check_branch
      %63 = sbr.rel (%p61) target = $region29
    $region28: #{tpu_custom_call.1} parent=1 // pred_region
      %64 = vst [vmem:[#allocation2] sm:$0xff] 0.0
      %65 = vst [vmem:[#allocation3] sm:$0xff] 0.0
    $region29: #{tpu_custom_call.1} parent=1 // pred_fallthru
      _
    %v66 = vld [vmem:[#allocation9] sm:$0xff]
    %v67 = vld [vmem:[#allocation9 + $0x8] sm:$0xff]
    %v68 = vld [vmem:[#allocation9 + $0x10] sm:$0xff]
    %v69 = vld [vmem:[#allocation9 + $0x18] sm:$0xff]
    %v70 = vld [vmem:[#allocation9 + $0x20] sm:$0xff]
    %v71 = vld [vmem:[#allocation9 + $0x28] sm:$0xff]
    %v72 = vld [vmem:[#allocation9 + $0x30] sm:$0xff]
    %v73 = vld [vmem:[#allocation9 + $0x38] sm:$0xff]
    %v74 = vld [vmem:[#allocation2] sm:$0xff]
    %v75 = vadd.f32 %v66, %v67
    %v76 = vadd.f32 %v75, %v68
    %v77 = vadd.f32 %v76, %v69
    %v78 = vadd.f32 %v77, %v70
    %v79 = vadd.f32 %v78, %v71
    %v80 = vadd.f32 %v79, %v72
    %v81 = vadd.f32 %v80, %v73
    %v82 = vadd.f32 %v74, %v81
    %83 = vst [vmem:[#allocation2] sm:$0xff] %v82
    %v84 = vld [vmem:[#allocation3] sm:$0xff]
    %v85 = vmul.f32 %v66, %v66
    %v86 = vmul.f32 %v67, %v67
    %v87 = vmul.f32 %v68, %v68
    %v88 = vmul.f32 %v69, %v69
    %v89 = vmul.f32 %v70, %v70
    %v90 = vmul.f32 %v71, %v71
    %v91 = vmul.f32 %v72, %v72
    %v92 = vmul.f32 %v73, %v73
    %v93 = vadd.f32 %v85, %v86
    %v94 = vadd.f32 %v93, %v87
    %v95 = vadd.f32 %v94, %v88
    %v96 = vadd.f32 %v95, %v89
    %v97 = vadd.f32 %v96, %v90
    %v98 = vadd.f32 %v97, %v91
    %v99 = vadd.f32 %v98, %v92
    %v100 = vadd.f32 %v84, %v99
    %101 = vst [vmem:[#allocation3] sm:$0xff] %v100
    // Predicated region
    $region30: #{tpu_custom_call.1} parent=1 // pred_check
      %p102 = pneg %p60
    $region31: #{tpu_custom_call.1} parent=1 // pred_check_branch
      %104 = sbr.rel (%p102) target = $region33
    $region32: #{tpu_custom_call.1} parent=1 // pred_region
      %v105 = vld [vmem:[#allocation2] sm:$0xff]
      %v106 = vrot.slane %v105, 4
      %v107 = vadd.f32 %v105, %v106
      %v108 = vrot.slane %v107, 2
      %v109 = vadd.f32 %v107, %v108
      %v110 = vrot.slane %v109, 1
      %v111 = vadd.f32 %v109, %v110
      %v112 = vld [vmem:[#allocation3] sm:$0xff]
      %113 = vadd.xlane.f32.xlu0 %v112
      %v114 = vpop.xlane.xlu0 %113
      %v115 = vrot.slane %v114, 4
      %v116 = vadd.f32 %v114, %v115
      %v117 = vrot.slane %v116, 2
      %v118 = vadd.f32 %v116, %v117
      %v119 = vrot.slane %v118, 1
      %v120 = vadd.f32 %v118, %v119
      %s121 = vtos %v120
      %v122 = vld [vmem:[#allocation4] sm:$0xff]
      %v123 = vld [vmem:[#allocation7] sm:$0xff]
      %v124 = vld [vmem:[#allocation7 + $0x8] sm:$0xff]
      %v125 = vld [vmem:[#allocation7 + $0x10] sm:$0xff]
      %v126 = vld [vmem:[#allocation7 + $0x18] sm:$0xff]
      %vm127 = vcmask 261120
      %v129 = vsel %vm127, %v122, 0
      %131 = vmatprep.subr.mxu0 0.0
      %132 = vmatpush1.msra.mxu0 %v123
      %133 = vmatprep.subr.mxu0 0.0
      %134 = vmatpush1.msra.mxu0 %v124
      %135 = vmatprep.subr.mxu0 0.0
      %136 = vmatpush1.msra.mxu0 %v125
      %137 = vmatprep.subr.mxu0 0.0
      %138 = vmatpush1.msra.mxu0 %v126
      %139 = vmatprep.subr.mxu0 0.0
      %140 = vmatpush1.msra.mxu0 0.0
      %141 = vmatprep.subr.mxu0 0.0
      %142 = vmatpush1.msra.mxu0 0.0
      %143 = vmatprep.subr.mxu0 0.0
      %144 = vmatpush1.msra.mxu0 0.0
      %145 = vmatprep.subr.mxu0 0.0
      %146 = vmatpush1.msra.mxu0 0.0
      %147 = vmatprep.subr.mxu0 0.0
      %148 = vmatpush1.msra.mxu0 0.0
      %149 = vmatprep.subr.mxu0 0.0
      %150 = vmatpush1.msra.mxu0 0.0
      %151 = vmatprep.subr.mxu0 0.0
      %152 = vmatpush1.msra.mxu0 0.0
      %153 = vmatprep.subr.mxu0 0.0
      %154 = vmatpush1.msra.mxu0 0.0
      %155 = vmatprep.subr.mxu0 0.0
      %156 = vmatpush1.msra.mxu0 0.0
      %157 = vmatprep.subr.mxu0 0.0
      %158 = vmatpush1.msra.mxu0 0.0
      %159 = vmatprep.subr.mxu0 0.0
      %160 = vmatpush1.msra.mxu0 0.0
      %161 = vmatprep.subr.mxu0 0.0
      %162 = vmatpush1.msra.mxu0 0.0
      %163 = vmatprep.subr.mxu0 0.0
      %164 = vmatpush1.msra.mxu0 0.0
      %165 = vmatprep.subr.mxu0 0.0
      %166 = vmatpush1.msra.mxu0 0.0
      %167 = vmatprep.subr.mxu0 0.0
      %168 = vmatpush1.msra.mxu0 0.0
      %169 = vmatprep.subr.mxu0 0.0
      %170 = vmatpush1.msra.mxu0 0.0
      %171 = vmatprep.subr.mxu0 0.0
      %172 = vmatpush1.msra.mxu0 0.0
      %173 = vmatprep.subr.mxu0 0.0
      %174 = vmatpush1.msra.mxu0 0.0
      %175 = vmatprep.subr.mxu0 0.0
      %176 = vmatpush1.msra.mxu0 0.0
      %177 = vmatprep.subr.mxu0 0.0
      %178 = vmatpush1.msra.mxu0 0.0
      %179 = vmatprep.subr.mxu0 0.0
      %180 = vmatpush1.msra.mxu0 0.0
      %181 = vmatprep.subr.mxu0 0.0
      %182 = vmatpush1.msra.mxu0 0.0
      %183 = vmatprep.subr.mxu0 0.0
      %184 = vmatpush1.msra.mxu0 0.0
      %185 = vmatprep.subr.mxu0 0.0
      %186 = vmatpush1.msra.mxu0 0.0
      %187 = vmatprep.subr.mxu0 0.0
      %188 = vmatpush1.msra.mxu0 0.0
      %189 = vmatprep.subr.mxu0 0.0
      %190 = vmatpush1.msra.mxu0 0.0
      %191 = vmatprep.subr.mxu0 0.0
      %192 = vmatpush1.msra.mxu0 0.0
      %193 = vmatprep.subr.mxu0 0.0
      %194 = vmatpush1.msra.mxu0 0.0
      %195 = vmatprep.mubr.f32.mxu0 0.0
      %196 = vmatmul.mubr.f32.gmra.mrb[0].mxu0 %v129
      %v197 = vpop.f32.mrb[0].mxu0
      %v198 = vadd.f32 0.0, %v197
      %v199 = vpop.f32.mrb[0].mxu0
      %200 = vdwg.mxu0
      %v201 = vmul.f32 %v198, %v198
      %v202 = vsel %vm127, %v201, 0.0
      %203 = vadd.xlane.f32.xlu0 %v202
      %v204 = vpop.xlane.xlu0 %203
      %206 = vrot.lane.b32.xlu0 %v198, 32
      %v207 = vpop.permute.xlu0 %206
      %209 = vrot.lane.b32.xlu0 %v198, 64
      %v210 = vpop.permute.xlu0 %209
      %212 = vrot.lane.b32.xlu0 %v198, 96
      %v213 = vpop.permute.xlu0 %212
      %v215 = vsel %vm127, %v198, %v207
      %vm216 = vcmask 523264
      %v217 = vsel %vm216, %v215, %v210
      %vm218 = vcmask 785408
      %v219 = vsel %vm218, %v217, %v213
      %v220 = vmul.f32 %v219, %v111
      %221 = vadd.xlane.f32.xlu0 %v220
      %v222 = vpop.xlane.xlu0 %221
      %p223 = scmp.eq.s32.totalorder 0, 0
      %s224 = scalar_select %p223, 256.0, 0.0
      %v225 = vstv %s224
      %v226 = vmul.f32 %v225, %v204
      %v227 = vstv %s121
      %v228 = vadd.f32 %v226, %v227
      %v229 = vmul.f32 %v222, 2.0
      %v230 = vsub.f32 %v228, %v229
      %231 = vst [vmem:[#allocation10] sm:$0xff] %v230
    $region33: #{tpu_custom_call.1} parent=1 // pred_fallthru
      _
    // Predicated region
    $region34: #{tpu_custom_call.1} parent=1 // pred_check
      _
    $region35: #{tpu_custom_call.1} parent=1 // pred_check_branch
      %233 = sbr.rel (0) target = $region37
    $region36: #{tpu_custom_call.1} parent=1 // pred_region
      %s235 = ssub.s32 128, 128
      %236 = vsyncadd [#allocation6], %s235
      %s238 = sshll.u32 [#allocation10], 4
      %s239 = int_to_ptr.vmem [resolvable:$true] %s238
      %241 = dma.vmem_to_hbm [thread:$0]  %s239, 128, %s3, [#allocation6]
    $region37: #{tpu_custom_call.1} parent=1 // pred_fallthru
      _
    // Predicated region
    $region38: #{tpu_custom_call.1} parent=1 // pred_check
      _
    $region39: #{tpu_custom_call.1} parent=1 // pred_check_branch
      %243 = sbr.rel (0) target = $region41
    $region40: #{tpu_custom_call.1} parent=1 // pred_region
      %244 = dma.done [#allocation6], 128
    $region41: #{tpu_custom_call.1} parent=1 // pred_fallthru
      _
    %245 = vsyncpa [#allocation5], 1
    %246 = vsyncpa [#allocation8], 1
    %247 = vsyncpa [#allocation6], 1

</llo_original>
